<compile_context>
chip_gen: v5e
topology: v5e:2x2
jax: 0.10.0
libtpu: 0.0.40
codegen_flags: <defaults>
</compile_context>

<pallas_src>
import functools

import jax
import jax.numpy as jnp
from jax.experimental import pallas as pl
from jax.experimental.pallas import tpu as pltpu


def _round_up(x, m):
    return ((x + m - 1) // m) * m


# --------------------------------- kernel ---------------------------------
def stack_gated_cnn_kernel(
    x_ref,      # (tb, S, H)          input activations (read only at layer 0)
    wab_ref,    # (Lw, K*H, 2H)       fused conv weights, im2col layout, outputs = [a | b]
    w1_ref,     # (Lw, H, H)          ff linear-1 weight, (in, out)
    w2_ref,     # (Lw, H, H)          ff linear-2 weight, (in, out)
    vec_ref,    # (Lw, 8, H) f32      rows = [b1, b2, g1, be1, g2, be2, 0, 0]
    out_ref,    # (tb, S, H)          final output (written only at last layer)
    x_scratch,  # VMEM (tb, front + S + back, H) f32   activation carry with conv halo
    *,
    kernel_size,
    resident_weights,
):
    layer = pl.program_id(1)
    n_layers = pl.num_programs(1)
    eps = 1e-5

    K = kernel_size
    pad = (K - 1) // 2
    front = _round_up(pad, 8) if pad > 0 else 0     # sublane-aligned interior start
    back = K - 1 - pad

    tb, S, H = x_ref.shape
    mxu_dtype = wab_ref.dtype                        # bf16 (or f32) matmul operands

    # resident: index weights by layer id; streamed: block l is already the current layer
    li = layer if resident_weights else 0

    @pl.when(layer == 0)
    def _():
        # zero only the halo rows once per batch tile; interior is overwritten by x
        if front > 0:
            x_scratch[:, :front, :] = jnp.zeros((tb, front, H), jnp.float32)
        if back > 0:
            x_scratch[:, front + S:, :] = jnp.zeros((tb, back, H), jnp.float32)
        x_scratch[:, front:front + S, :] = x_ref[...].astype(jnp.float32)

    # ---- GatedCNN: im2col over the K taps, one MXU matmul produces both gates ----
    # cast each tap to the MXU dtype BEFORE the lane concat (halves im2col bytes)
    cols = [
        x_scratch[:, front - pad + j:front - pad + j + S, :].astype(mxu_dtype)
        for j in range(K)
    ]
    xcol = jnp.concatenate(cols, axis=-1).reshape(tb * S, K * H)      # (tb*S, K*H) bf16
    ab = jnp.dot(xcol, wab_ref[li], preferred_element_type=jnp.float32)  # (tb*S, 2H) f32
    a = ab[:, :H]
    b = ab[:, H:]

    x_in = x_scratch[:, front:front + S, :].reshape(tb * S, H)        # f32 residual input
    x2 = a * jax.nn.sigmoid(b) + x_in                                 # gcnn_x + x

    vec = vec_ref[li]                                                 # (8, H) f32
    b1, b2 = vec[0:1], vec[1:2]
    g1, be1 = vec[2:3], vec[3:4]
    g2, be2 = vec[4:5], vec[5:6]

    # ---- two-pass LayerNorm (matches PyTorch nn.LayerNorm) ----
    def layernorm(v, g, be):
        mu = jnp.mean(v, axis=-1, keepdims=True)
        d = v - mu
        var = jnp.mean(d * d, axis=-1, keepdims=True)
        return d * jax.lax.rsqrt(var + eps) * g + be

    x2 = layernorm(x2, g1, be1)

    # ---- Feed-forward: relu(Linear1) -> Linear2, residual, LayerNorm ----
    l1 = jnp.dot(x2.astype(mxu_dtype), w1_ref[li],
                 preferred_element_type=jnp.float32) + b1
    l1 = jnp.maximum(l1, 0.0)
    l2 = jnp.dot(l1.astype(mxu_dtype), w2_ref[li],
                 preferred_element_type=jnp.float32) + b2
    y2 = layernorm(x2 + l2, g2, be2)

    y3 = y2.reshape(tb, S, H)

    @pl.when(layer < n_layers - 1)
    def _():
        x_scratch[:, front:front + S, :] = y3                         # aligned interior store

    @pl.when(layer == n_layers - 1)
    def _():
        out_ref[...] = y3.astype(out_ref.dtype)


# ------------------------------ param packing ------------------------------
def prepare_params(raw, weight_dtype=jnp.bfloat16):
    """Convert PyTorch-layout params into kernel-friendly layouts.

    raw: conv_a/conv_b (L, H_out, H_in, K); w1/w2 (L, out, in); b/g/be (L, H).
    Returns: wab (L, K*H, 2H) [a|b outputs], w1/w2 (L, in, out), vecs (L, 8, H).
    """
    L, H, _, K = raw["conv_a"].shape
    wa = jnp.transpose(raw["conv_a"], (0, 3, 2, 1)).reshape(L, K * H, H)  # [l, j*H+i, o]
    wb = jnp.transpose(raw["conv_b"], (0, 3, 2, 1)).reshape(L, K * H, H)
    zeros = jnp.zeros_like(raw["b1"])
    vecs = jnp.stack(
        [raw["b1"], raw["b2"], raw["g1"], raw["be1"], raw["g2"], raw["be2"], zeros, zeros],
        axis=1,
    ).astype(jnp.float32)                                                 # (L, 8, H)
    return {
        "wab": jnp.concatenate([wa, wb], axis=-1).astype(weight_dtype),   # (L, K*H, 2H)
        "w1": jnp.transpose(raw["w1"], (0, 2, 1)).astype(weight_dtype),   # (L, in, out)
        "w2": jnp.transpose(raw["w2"], (0, 2, 1)).astype(weight_dtype),
        "vecs": vecs,
    }


# ------------------------------ sizing helpers ------------------------------
def _vmem_capacity_bytes():
    try:
        info = pltpu.get_tpu_info()
        cap = getattr(info, "vmem_capacity_bytes", None)
        if cap:
            return int(cap)
    except Exception:
        pass
    return 64 * 2**20  # conservative (v7x per-TC)


def _vmem_bytes_estimate(tb, S, H, K, wbytes, L, resident):
    """Conservative padded-footprint estimate (blocks + scratch + in-kernel transients)."""
    pad = (K - 1) // 2
    front = _round_up(pad, 8) if pad > 0 else 0
    back = K - 1 - pad
    Sr = _round_up(S, 8)
    Hl = _round_up(H, 128)
    H2l = _round_up(2 * H, 128)
    KHl = _round_up(K * H, 128)
    rows = _round_up(tb * S, 8)

    act_blk = tb * Sr * Hl * 4
    est = 2 * act_blk                                          # x input block (dbl-buffered)
    est += 2 * act_blk                                         # output block
    est += tb * _round_up(front + S + back, 8) * Hl * 4        # activation carry scratch
    wl = L if resident else 1
    est += 2 * wl * (_round_up(K * H, 8) * H2l + 2 * _round_up(H, 8) * Hl) * wbytes
    est += 2 * wl * 8 * Hl * 4                                 # packed per-layer vectors
    est += rows * KHl * wbytes                                 # im2col buffer (mxu dtype)
    est += rows * H2l * 4                                      # ab
    est += 4 * rows * Hl * 4                                   # x2 / l1 / l2 / y2 temporaries
    return est


def _pick_batch_tile(B, S, H, K, wbytes, L, resident, budget):
    divs = [d for d in range(1, B + 1) if B % d == 0]
    fitting = [d for d in divs
               if _vmem_bytes_estimate(d, S, H, K, wbytes, L, resident) <= budget]
    if not fitting:
        return 1
    # keep >=2 batch-tile grid steps so the parallel axis can split across v7x's two TCs
    mega = [d for d in fitting if B // d >= 2]
    pool = mega if mega else fitting
    if resident:
        good = [d for d in pool if d * S >= 512]               # decent MXU M dimension
        return min(good) if good else max(pool)
    return max(pool)                                           # amortize weight re-stream


# --------------------------------- wrapper ---------------------------------
def stack_gated_cnn(x, params, kernel_size, *, batch_tile=None):
    """x: (B, S, H) float32.  params: output of prepare_params."""
    B, S, H = x.shape
    L = params["w1"].shape[0]
    K = kernel_size
    pad = (K - 1) // 2
    front = _round_up(pad, 8) if pad > 0 else 0
    back = K - 1 - pad
    wbytes = jnp.dtype(params["wab"].dtype).itemsize

    budget = int(0.85 * _vmem_capacity_bytes())

    # resident weights if all layers fit comfortably (typical on v5e/v6e 128 MiB VMEM)
    Hl = _round_up(H, 128)
    weight_total = (2 * L * (_round_up(K * H, 8) * _round_up(2 * H, 128)
                             + 2 * _round_up(H, 8) * Hl) * wbytes
                    + 2 * L * 8 * Hl * 4)
    resident = weight_total <= int(0.4 * budget)

    if batch_tile is None:
        tb = _pick_batch_tile(B, S, H, K, wbytes, L, resident, budget)
    else:
        tb = batch_tile
    assert B % tb == 0, "batch_tile must divide batch"

    kern = functools.partial(stack_gated_cnn_kernel, kernel_size=K,
                             resident_weights=resident)

    if resident:
        wab_spec = pl.BlockSpec((L, K * H, 2 * H), lambda b, l: (0, 0, 0))
        w1_spec = pl.BlockSpec((L, H, H), lambda b, l: (0, 0, 0))
        w2_spec = pl.BlockSpec((L, H, H), lambda b, l: (0, 0, 0))
        vec_spec = pl.BlockSpec((L, 8, H), lambda b, l: (0, 0, 0))
    else:
        wab_spec = pl.BlockSpec((1, K * H, 2 * H), lambda b, l: (l, 0, 0))
        w1_spec = pl.BlockSpec((1, H, H), lambda b, l: (l, 0, 0))
        w2_spec = pl.BlockSpec((1, H, H), lambda b, l: (l, 0, 0))
        vec_spec = pl.BlockSpec((1, 8, H), lambda b, l: (l, 0, 0))

    grid_spec = pltpu.PrefetchScalarGridSpec(
        num_scalar_prefetch=0,
        grid=(B // tb, L),
        in_specs=[
            pl.BlockSpec((tb, S, H), lambda b, l: (b, 0, 0)),   # x
            wab_spec,                                           # wab
            w1_spec,                                            # w1 (in,out)
            w2_spec,                                            # w2 (in,out)
            vec_spec,                                           # packed b1,b2,g1,be1,g2,be2
        ],
        out_specs=pl.BlockSpec((tb, S, H), lambda b, l: (b, 0, 0)),
        scratch_shapes=[pltpu.VMEM((tb, front + S + back, H), jnp.float32)],
    )

    return pl.pallas_call(
        kern,
        out_shape=jax.ShapeDtypeStruct((B, S, H), x.dtype),
        grid_spec=grid_spec,
        compiler_params=pltpu.CompilerParams(
            dimension_semantics=("parallel", "arbitrary"),
            vmem_limit_bytes=budget,
        ),
    )(x, params["wab"], params["w1"], params["w2"], params["vecs"])


# ------------------------- pure-JAX reference (PyTorch semantics) -------------------------
def reference(x, raw, kernel_size):
    K = kernel_size
    pad = (K - 1) // 2
    L = raw["conv_a"].shape[0]
    eps = 1e-5

    def conv1d_same(x, w):  # x: (B, S, H), w: (H_out, H_in, K)  (PyTorch Conv1d weight)
        S = x.shape[1]
        xp = jnp.pad(x, ((0, 0), (pad, K - 1 - pad), (0, 0)))
        out = jnp.zeros_like(x)
        for j in range(K):
            out = out + xp[:, j:j + S, :] @ w[:, :, j].T
        return out

    def layernorm(v, g, b):
        mu = v.mean(-1, keepdims=True)
        var = ((v - mu) ** 2).mean(-1, keepdims=True)
        return (v - mu) / jnp.sqrt(var + eps) * g + b

    for i in range(L):
        a = conv1d_same(x, raw["conv_a"][i])
        b = conv1d_same(x, raw["conv_b"][i])
        x = layernorm(a * jax.nn.sigmoid(b) + x, raw["g1"][i], raw["be1"][i])
        l1 = jnp.maximum(x @ raw["w1"][i].T + raw["b1"][i], 0.0)
        l2 = l1 @ raw["w2"][i].T + raw["b2"][i]
        x = layernorm(x + l2, raw["g2"][i], raw["be2"][i])
    return x


if __name__ == "__main__":
    # config consistent with the PyTorch module (odd kernel_size -> true "same" padding)
    B, S = 2, 8
    hidden_size = 32
    kernel_size = 3
    num_layers = 2
    L, H, K = num_layers, hidden_size, kernel_size

    # deterministic parameters (PyTorch-native layouts)
    kp = jax.random.split(jax.random.PRNGKey(0), 9)
    raw = {
        "conv_a": 0.2 * jax.random.normal(kp[0], (L, H, H, K), jnp.float32),  # (out,in,K)
        "conv_b": 0.2 * jax.random.normal(kp[1], (L, H, H, K), jnp.float32),
        "w1": 0.2 * jax.random.normal(kp[2], (L, H, H), jnp.float32),          # (out,in)
        "b1": 0.1 * jax.random.normal(kp[3], (L, H), jnp.float32),
        "b2": 0.1 * jax.random.normal(kp[4], (L, H), jnp.float32),
        "w2": 0.2 * jax.random.normal(kp[5], (L, H, H), jnp.float32),
        "g1": 1.0 + 0.1 * jax.random.normal(kp[6], (L, H), jnp.float32),
        "be1": jnp.zeros((L, H), jnp.float32),
        "g2": 1.0 + 0.1 * jax.random.normal(kp[7], (L, H), jnp.float32),
        "be2": jnp.zeros((L, H), jnp.float32),
    }
    x = jax.random.normal(kp[8], (B, S, H), jnp.float32)

    # --- check 1: exact math path (f32 weights) against the PyTorch-semantics reference ---
    params_f32 = prepare_params(raw, weight_dtype=jnp.float32)
    out_f32 = jax.block_until_ready(stack_gated_cnn(x, params_f32, kernel_size))
    ref_f32 = reference(x, raw, kernel_size)
    assert out_f32.shape == (B, S, H)
    err_f32 = float(jnp.max(jnp.abs(out_f32 - ref_f32)))
    assert err_f32 < 1e-3, err_f32

    # --- check 2: optimized bf16-weight path against a bf16-rounded-weight reference ---
    params_bf16 = prepare_params(raw, weight_dtype=jnp.bfloat16)
    out_bf16 = jax.block_until_ready(stack_gated_cnn(x, params_bf16, kernel_size))
    raw_q = dict(raw)
    for k in ("conv_a", "conv_b", "w1", "w2"):
        raw_q[k] = raw[k].astype(jnp.bfloat16).astype(jnp.float32)
    ref_q = reference(x, raw_q, kernel_size)
    err_bf16 = float(jnp.max(jnp.abs(out_bf16 - ref_q)))
    assert err_bf16 < 5e-2, err_bf16   # residual diff = bf16 rounding of matmul activations

    print("KERNEL_OK")
</pallas_src>

<mosaic_0001>
module attributes {stable_mosaic.version = 11 : i64} {
  func.func @stack_gated_cnn_kernel(%arg0: i32, %arg1: i32, %arg2: memref<1x8x32xf32, #tpu.memory_space<vmem>>, %arg3: memref<2x96x64xf32, #tpu.memory_space<vmem>>, %arg4: memref<2x32x32xf32, #tpu.memory_space<vmem>>, %arg5: memref<2x32x32xf32, #tpu.memory_space<vmem>>, %arg6: memref<2x8x32xf32, #tpu.memory_space<vmem>>, %arg7: memref<1x8x32xf32, #tpu.memory_space<vmem>>, %arg8: memref<1x17x32xf32, #tpu.memory_space<vmem>>) attributes {dimension_semantics = [#tpu.dimension_semantics<parallel>, #tpu.dimension_semantics<arbitrary>], iteration_bounds = array<i64: 2, 2>, scalar_prefetch = 0 : i64, scratch_operands = 1 : i64, tpu.core_type = #tpu.core_type<tc>, window_params = [{transform_indices = @transform_0, window_bounds = array<i64: 1, 8, 32>}, {pipeline_mode = #tpu.pipeline_mode<synchronous>, transform_indices = @transform_1, window_bounds = array<i64: 2, 96, 64>}, {pipeline_mode = #tpu.pipeline_mode<synchronous>, transform_indices = @transform_2, window_bounds = array<i64: 2, 32, 32>}, {pipeline_mode = #tpu.pipeline_mode<synchronous>, transform_indices = @transform_3, window_bounds = array<i64: 2, 32, 32>}, {pipeline_mode = #tpu.pipeline_mode<synchronous>, transform_indices = @transform_4, window_bounds = array<i64: 2, 8, 32>}, {transform_indices = @transform_5, window_bounds = array<i64: 1, 8, 32>}]} {
    %c0_i32 = arith.constant 0 : i32
    %0 = arith.cmpi eq, %arg1, %c0_i32 : i32
    %1 = arith.extui %0 : i1 to i32
    %c0_i32_0 = arith.constant 0 : i32
    %2 = arith.cmpi ne, %1, %c0_i32_0 : i32
    scf.if %2 {
      %cst_34 = arith.constant 0.000000e+00 : f32
      %94 = vector.broadcast %cst_34 : f32 to vector<1x8x32xf32>
      %c0_35 = arith.constant 0 : index
      %c0_36 = arith.constant 0 : index
      %c0_37 = arith.constant 0 : index
      %95 = vector.load %arg8[%c0_35, %c0_36, %c0_37] : memref<1x17x32xf32, #tpu.memory_space<vmem>>, vector<1x8x32xf32>
      tpu.vector_store %arg8[%c0_35, %c0_36, %c0_37], %94 {strides = array<i32>} : memref<1x17x32xf32, #tpu.memory_space<vmem>>, vector<1x8x32xf32>,
      %cst_38 = arith.constant 0.000000e+00 : f32
      %96 = vector.broadcast %cst_38 : f32 to vector<1x1x32xf32>
      %c0_39 = arith.constant 0 : index
      %c16 = arith.constant 16 : index
      %c0_40 = arith.constant 0 : index
      %97 = vector.load %arg8[%c0_39, %c16, %c0_40] : memref<1x17x32xf32, #tpu.memory_space<vmem>>, vector<1x1x32xf32>
      tpu.vector_store %arg8[%c0_39, %c16, %c0_40], %96 {strides = array<i32>} : memref<1x17x32xf32, #tpu.memory_space<vmem>>, vector<1x1x32xf32>,
      %c0_41 = arith.constant 0 : index
      %c0_42 = arith.constant 0 : index
      %c0_43 = arith.constant 0 : index
      %98 = vector.load %arg2[%c0_41, %c0_42, %c0_43] : memref<1x8x32xf32, #tpu.memory_space<vmem>>, vector<1x8x32xf32>
      %c0_44 = arith.constant 0 : index
      %c8_45 = arith.constant 8 : index
      %c0_46 = arith.constant 0 : index
      %99 = vector.load %arg8[%c0_44, %c8_45, %c0_46] : memref<1x17x32xf32, #tpu.memory_space<vmem>>, vector<1x8x32xf32>
      tpu.vector_store %arg8[%c0_44, %c8_45, %c0_46], %98 {strides = array<i32>} : memref<1x17x32xf32, #tpu.memory_space<vmem>>, vector<1x8x32xf32>,
    } else {
    }
    %c0 = arith.constant 0 : index
    %c7 = arith.constant 7 : index
    %c0_1 = arith.constant 0 : index
    %3 = vector.load %arg8[%c0, %c7, %c0_1] : memref<1x17x32xf32, #tpu.memory_space<vmem>>, vector<1x8x32xf32>
    %c0_2 = arith.constant 0 : index
    %c8 = arith.constant 8 : index
    %c0_3 = arith.constant 0 : index
    %4 = vector.load %arg8[%c0_2, %c8, %c0_3] : memref<1x17x32xf32, #tpu.memory_space<vmem>>, vector<1x8x32xf32>
    %c0_4 = arith.constant 0 : index
    %c9 = arith.constant 9 : index
    %c0_5 = arith.constant 0 : index
    %5 = vector.load %arg8[%c0_4, %c9, %c0_5] : memref<1x17x32xf32, #tpu.memory_space<vmem>>, vector<1x8x32xf32>
    %6 = tpu.concatenate %3, %4, %5 in 2 : vector<1x8x32xf32>, vector<1x8x32xf32>, vector<1x8x32xf32> -> vector<1x8x96xf32>
    %7 = vector.shape_cast %6 : vector<1x8x96xf32> to vector<8x96xf32>
    %8 = arith.index_cast %arg1 : i32 to index
    %c0_6 = arith.constant 0 : index
    %c0_7 = arith.constant 0 : index
    %9 = vector.load %arg3[%8, %c0_6, %c0_7] : memref<2x96x64xf32, #tpu.memory_space<vmem>>, vector<1x96x64xf32>
    %10 = vector.shape_cast %9 : vector<1x96x64xf32> to vector<96x64xf32>
    %cst = arith.constant dense<0.000000e+00> : vector<8x64xf32>
    %11 = tpu.matmul %7, %10, %cst {dimension_numbers = #tpu.dot_dimension_numbers<[1], [0], [0], [1], [0, 0, 1, 1], [], []>} : vector<8x96xf32>, vector<96x64xf32>, vector<8x64xf32> -> vector<8x64xf32>
    %12 = vector.extract_strided_slice %11 {offsets = [0, 0], sizes = [8, 32], strides = [1, 1]} : vector<8x64xf32> to vector<8x32xf32>
    %13 = vector.extract_strided_slice %11 {offsets = [0, 32], sizes = [8, 32], strides = [1, 1]} : vector<8x64xf32> to vector<8x32xf32>
    %c0_8 = arith.constant 0 : index
    %c8_9 = arith.constant 8 : index
    %c0_10 = arith.constant 0 : index
    %14 = vector.load %arg8[%c0_8, %c8_9, %c0_10] : memref<1x17x32xf32, #tpu.memory_space<vmem>>, vector<1x8x32xf32>
    %15 = vector.shape_cast %14 : vector<1x8x32xf32> to vector<8x32xf32>
    %16 = arith.negf %13 : vector<8x32xf32>
    %17 = math.exp %16 : vector<8x32xf32>
    %cst_11 = arith.constant 1.000000e+00 : f32
    %18 = vector.broadcast %cst_11 : f32 to vector<8x32xf32>
    %19 = arith.addf %18, %17 : vector<8x32xf32>
    %20 = arith.divf %18, %19 : vector<8x32xf32>
    %21 = arith.mulf %12, %20 : vector<8x32xf32>
    %22 = arith.addf %21, %15 : vector<8x32xf32>
    %23 = arith.index_cast %arg1 : i32 to index
    %c0_12 = arith.constant 0 : index
    %c0_13 = arith.constant 0 : index
    %24 = vector.load %arg6[%23, %c0_12, %c0_13] : memref<2x8x32xf32, #tpu.memory_space<vmem>>, vector<1x8x32xf32>
    %25 = vector.shape_cast %24 : vector<1x8x32xf32> to vector<8x32xf32>
    %26 = vector.extract_strided_slice %25 {offsets = [0, 0], sizes = [1, 32], strides = [1, 1]} : vector<8x32xf32> to vector<1x32xf32>
    %27 = vector.extract_strided_slice %25 {offsets = [1, 0], sizes = [1, 32], strides = [1, 1]} : vector<8x32xf32> to vector<1x32xf32>
    %28 = vector.extract_strided_slice %25 {offsets = [2, 0], sizes = [1, 32], strides = [1, 1]} : vector<8x32xf32> to vector<1x32xf32>
    %29 = vector.extract_strided_slice %25 {offsets = [3, 0], sizes = [1, 32], strides = [1, 1]} : vector<8x32xf32> to vector<1x32xf32>
    %30 = vector.extract_strided_slice %25 {offsets = [4, 0], sizes = [1, 32], strides = [1, 1]} : vector<8x32xf32> to vector<1x32xf32>
    %31 = vector.extract_strided_slice %25 {offsets = [5, 0], sizes = [1, 32], strides = [1, 1]} : vector<8x32xf32> to vector<1x32xf32>
    %cst_14 = arith.constant dense<0.000000e+00> : vector<8xf32>
    %32 = vector.multi_reduction <add>, %22, %cst_14 [1] : vector<8x32xf32> to vector<8xf32>
    %33 = vector.shape_cast %32 : vector<8xf32> to vector<8x1xf32>
    %cst_15 = arith.constant 3.200000e+01 : f32
    %34 = vector.broadcast %cst_15 : f32 to vector<8x1xf32>
    %35 = arith.divf %33, %34 : vector<8x1xf32>
    %36 = vector.broadcast %35 : vector<8x1xf32> to vector<8x32xf32>
    %37 = arith.subf %22, %36 : vector<8x32xf32>
    %38 = arith.mulf %37, %37 : vector<8x32xf32>
    %cst_16 = arith.constant dense<0.000000e+00> : vector<8xf32>
    %39 = vector.multi_reduction <add>, %38, %cst_16 [1] : vector<8x32xf32> to vector<8xf32>
    %40 = vector.shape_cast %39 : vector<8xf32> to vector<8x1xf32>
    %cst_17 = arith.constant 3.200000e+01 : f32
    %41 = vector.broadcast %cst_17 : f32 to vector<8x1xf32>
    %42 = arith.divf %40, %41 : vector<8x1xf32>
    %cst_18 = arith.constant 9.99999974E-6 : f32
    %43 = vector.broadcast %cst_18 : f32 to vector<8x1xf32>
    %44 = arith.addf %42, %43 : vector<8x1xf32>
    %45 = math.rsqrt %44 : vector<8x1xf32>
    %46 = vector.broadcast %45 : vector<8x1xf32> to vector<8x32xf32>
    %47 = arith.mulf %37, %46 : vector<8x32xf32>
    %48 = vector.broadcast %28 : vector<1x32xf32> to vector<8x32xf32>
    %49 = arith.mulf %47, %48 : vector<8x32xf32>
    %50 = vector.broadcast %29 : vector<1x32xf32> to vector<8x32xf32>
    %51 = arith.addf %49, %50 : vector<8x32xf32>
    %52 = arith.index_cast %arg1 : i32 to index
    %c0_19 = arith.constant 0 : index
    %c0_20 = arith.constant 0 : index
    %53 = vector.load %arg4[%52, %c0_19, %c0_20] : memref<2x32x32xf32, #tpu.memory_space<vmem>>, vector<1x32x32xf32>
    %54 = vector.shape_cast %53 : vector<1x32x32xf32> to vector<32x32xf32>
    %cst_21 = arith.constant dense<0.000000e+00> : vector<8x32xf32>
    %55 = tpu.matmul %51, %54, %cst_21 {dimension_numbers = #tpu.dot_dimension_numbers<[1], [0], [0], [1], [0, 0, 1, 1], [], []>} : vector<8x32xf32>, vector<32x32xf32>, vector<8x32xf32> -> vector<8x32xf32>
    %56 = vector.broadcast %26 : vector<1x32xf32> to vector<8x32xf32>
    %57 = arith.addf %55, %56 : vector<8x32xf32>
    %cst_22 = arith.constant 0.000000e+00 : f32
    %58 = vector.broadcast %cst_22 : f32 to vector<8x32xf32>
    %59 = arith.maximumf %57, %58 : vector<8x32xf32>
    %60 = arith.index_cast %arg1 : i32 to index
    %c0_23 = arith.constant 0 : index
    %c0_24 = arith.constant 0 : index
    %61 = vector.load %arg5[%60, %c0_23, %c0_24] : memref<2x32x32xf32, #tpu.memory_space<vmem>>, vector<1x32x32xf32>
    %62 = vector.shape_cast %61 : vector<1x32x32xf32> to vector<32x32xf32>
    %cst_25 = arith.constant dense<0.000000e+00> : vector<8x32xf32>
    %63 = tpu.matmul %59, %62, %cst_25 {dimension_numbers = #tpu.dot_dimension_numbers<[1], [0], [0], [1], [0, 0, 1, 1], [], []>} : vector<8x32xf32>, vector<32x32xf32>, vector<8x32xf32> -> vector<8x32xf32>
    %64 = vector.broadcast %27 : vector<1x32xf32> to vector<8x32xf32>
    %65 = arith.addf %63, %64 : vector<8x32xf32>
    %66 = arith.addf %51, %65 : vector<8x32xf32>
    %cst_26 = arith.constant dense<0.000000e+00> : vector<8xf32>
    %67 = vector.multi_reduction <add>, %66, %cst_26 [1] : vector<8x32xf32> to vector<8xf32>
    %68 = vector.shape_cast %67 : vector<8xf32> to vector<8x1xf32>
    %cst_27 = arith.constant 3.200000e+01 : f32
    %69 = vector.broadcast %cst_27 : f32 to vector<8x1xf32>
    %70 = arith.divf %68, %69 : vector<8x1xf32>
    %71 = vector.broadcast %70 : vector<8x1xf32> to vector<8x32xf32>
    %72 = arith.subf %66, %71 : vector<8x32xf32>
    %73 = arith.mulf %72, %72 : vector<8x32xf32>
    %cst_28 = arith.constant dense<0.000000e+00> : vector<8xf32>
    %74 = vector.multi_reduction <add>, %73, %cst_28 [1] : vector<8x32xf32> to vector<8xf32>
    %75 = vector.shape_cast %74 : vector<8xf32> to vector<8x1xf32>
    %cst_29 = arith.constant 3.200000e+01 : f32
    %76 = vector.broadcast %cst_29 : f32 to vector<8x1xf32>
    %77 = arith.divf %75, %76 : vector<8x1xf32>
    %cst_30 = arith.constant 9.99999974E-6 : f32
    %78 = vector.broadcast %cst_30 : f32 to vector<8x1xf32>
    %79 = arith.addf %77, %78 : vector<8x1xf32>
    %80 = math.rsqrt %79 : vector<8x1xf32>
    %81 = vector.broadcast %80 : vector<8x1xf32> to vector<8x32xf32>
    %82 = arith.mulf %72, %81 : vector<8x32xf32>
    %83 = vector.broadcast %30 : vector<1x32xf32> to vector<8x32xf32>
    %84 = arith.mulf %82, %83 : vector<8x32xf32>
    %85 = vector.broadcast %31 : vector<1x32xf32> to vector<8x32xf32>
    %86 = arith.addf %84, %85 : vector<8x32xf32>
    %87 = vector.shape_cast %86 : vector<8x32xf32> to vector<1x8x32xf32>
    %c1_i32 = arith.constant 1 : i32
    %88 = arith.cmpi slt, %arg1, %c1_i32 : i32
    %89 = arith.extui %88 : i1 to i32
    %c0_i32_31 = arith.constant 0 : i32
    %90 = arith.cmpi ne, %89, %c0_i32_31 : i32
    scf.if %90 {
      %c0_34 = arith.constant 0 : index
      %c8_35 = arith.constant 8 : index
      %c0_36 = arith.constant 0 : index
      %94 = vector.load %arg8[%c0_34, %c8_35, %c0_36] : memref<1x17x32xf32, #tpu.memory_space<vmem>>, vector<1x8x32xf32>
      tpu.vector_store %arg8[%c0_34, %c8_35, %c0_36], %87 {strides = array<i32>} : memref<1x17x32xf32, #tpu.memory_space<vmem>>, vector<1x8x32xf32>,
    } else {
    }
    %c1_i32_32 = arith.constant 1 : i32
    %91 = arith.cmpi eq, %arg1, %c1_i32_32 : i32
    %92 = arith.extui %91 : i1 to i32
    %c0_i32_33 = arith.constant 0 : i32
    %93 = arith.cmpi ne, %92, %c0_i32_33 : i32
    scf.if %93 {
      %c0_34 = arith.constant 0 : index
      %c0_35 = arith.constant 0 : index
      %c0_36 = arith.constant 0 : index
      %94 = vector.load %arg7[%c0_34, %c0_35, %c0_36] : memref<1x8x32xf32, #tpu.memory_space<vmem>>, vector<1x8x32xf32>
      tpu.vector_store %arg7[%c0_34, %c0_35, %c0_36], %87 {strides = array<i32>} : memref<1x8x32xf32, #tpu.memory_space<vmem>>, vector<1x8x32xf32>,
    } else {
    }
    return
  }
  func.func @transform_0(%arg0: i32, %arg1: i32) -> (i32, i32, i32) {
    %c0_i32 = arith.constant 0 : i32
    %c0_i32_0 = arith.constant 0 : i32
    %c0_i32_1 = arith.constant 0 : i32
    return %arg0, %c0_i32, %c0_i32_0 : i32, i32, i32
  }
  func.func @transform_1(%arg0: i32, %arg1: i32) -> (i32, i32, i32) {
    %c0_i32 = arith.constant 0 : i32
    %c0_i32_0 = arith.constant 0 : i32
    %c0_i32_1 = arith.constant 0 : i32
    %c0_i32_2 = arith.constant 0 : i32
    return %c0_i32, %c0_i32_0, %c0_i32_1 : i32, i32, i32
  }
  func.func @transform_2(%arg0: i32, %arg1: i32) -> (i32, i32, i32) {
    %c0_i32 = arith.constant 0 : i32
    %c0_i32_0 = arith.constant 0 : i32
    %c0_i32_1 = arith.constant 0 : i32
    %c0_i32_2 = arith.constant 0 : i32
    return %c0_i32, %c0_i32_0, %c0_i32_1 : i32, i32, i32
  }
  func.func @transform_3(%arg0: i32, %arg1: i32) -> (i32, i32, i32) {
    %c0_i32 = arith.constant 0 : i32
    %c0_i32_0 = arith.constant 0 : i32
    %c0_i32_1 = arith.constant 0 : i32
    %c0_i32_2 = arith.constant 0 : i32
    return %c0_i32, %c0_i32_0, %c0_i32_1 : i32, i32, i32
  }
  func.func @transform_4(%arg0: i32, %arg1: i32) -> (i32, i32, i32) {
    %c0_i32 = arith.constant 0 : i32
    %c0_i32_0 = arith.constant 0 : i32
    %c0_i32_1 = arith.constant 0 : i32
    %c0_i32_2 = arith.constant 0 : i32
    return %c0_i32, %c0_i32_0, %c0_i32_1 : i32, i32, i32
  }
  func.func @transform_5(%arg0: i32, %arg1: i32) -> (i32, i32, i32) {
    %c0_i32 = arith.constant 0 : i32
    %c0_i32_0 = arith.constant 0 : i32
    %c0_i32_1 = arith.constant 0 : i32
    return %arg0, %c0_i32, %c0_i32_0 : i32, i32, i32
  }
}

</mosaic_0001>

<llo_original>
// kernel: tpu_custom_call.1
$region0: #{tpu_custom_call.1}
  #allocation0 [shape = 'u32[]', space=smem, size = 0x4, offset = 0x4, fixed_abs, tag = 'smem constant byte address 0x4 - core index']
  #allocation1 [shape = 'u32[72,128]{1,0:T(1,128)}', space=vmem, size = 0x9000, scoped, tag = 'internal scratch']
  #allocation2 [shape = 'f32[1,17,32]{2,1,0:T(8,128)}', space=vmem, size = 0x3000, scoped, tag = 'scratch operand']
  %s0 = inlined_call_operand.vmem [shape: f32[2,8,32], index: 0, kind: input, shape index: {}]
  %s1 = inlined_call_operand.vmem [shape: f32[2,96,64], index: 1, kind: input, shape index: {}]
  %s2 = inlined_call_operand.vmem [shape: f32[2,32,32], index: 2, kind: input, shape index: {}]
  %s3 = inlined_call_operand.vmem [shape: f32[2,32,32], index: 3, kind: input, shape index: {}]
  %s4 = inlined_call_operand.vmem [shape: f32[2,8,32], index: 4, kind: input, shape index: {}]
  %s5 = inlined_call_operand.hbm [shape: f32[2,8,32], index: 5, kind: output, shape index: {}]
  %s6 = sld [smem:[#allocation0]]
  $region65: #{tpu_custom_call.1} parent=0
    _
  %s8 = ssub.s32 1, %s6
  %s9 = scalar_select 0, %s8, %s6
  $region1: #{tpu_custom_call.1} parent=0
    #allocation3 [shape = 'u8[8192]{0}', space=vmem, size = 0x2000, scoped, tag = 'output window, operand 0']
    #allocation4 [shape = 's32[2]{0}', space=sflag, size = 0x8, scoped, tag = 'scoped memory for tpu_custom_call.1']
    %10 = vsyncpa [#allocation4], 0
    %s11 = scalar_lea.sflag [#allocation4], 1
    %12 = vsyncpa %s11, 0
    loop: start=0, step=1, limit=6
    $region2: #{tpu_custom_call.1} parent=1 // loop_pre_header
      _
    $region3: #{tpu_custom_call.1} parent=1 // loop_header
      %s14 = sphi 0, %s18
      %p15 = scmp.ge.s32.totalorder %s14, 6
      %s21 = sphi 0, %s33
      %s22 = sphi 0, %s29
      %s23 = sphi 0, %s21
      %s24 = sphi 0, %s22
      %s25 = sphi 0, %s23
      %s26 = sphi 0, %s24
      %s36 = sphi 0, %s38
      %s39 = sphi 0, %s36
      %s40 = sphi 0, %s39
      %s56 = sphi 0, %s40
      %s60 = sphi 0, %s60
      %s62 = sphi 0, %s60
      %s63 = sphi 0, %s62
      %s77 = sphi 0, %s63
      %s81 = sphi 0, %s81
      %s83 = sphi 0, %s81
      %s84 = sphi 0, %s83
      %s98 = sphi 0, %s84
      %s102 = sphi 0, %s102
      %s104 = sphi 0, %s102
      %s105 = sphi 0, %s104
      %s119 = sphi 0, %s105
      %s123 = sphi 0, %s123
      %s125 = sphi 0, %s123
      %s126 = sphi 0, %s125
      %s140 = sphi 0, %s126
      %s146 = sphi 0, %s148
      %s149 = sphi 0, %s146
      %s150 = sphi 0, %s149
      %s166 = sphi 0, %s150
    $region4: #{tpu_custom_call.1} parent=1 // loop_header_branch
      %17 = sbr.rel (%p15) target = $region8
    $region5: #{tpu_custom_call.1} parent=1 // loop_body
      %s19 = ssub.s32 %s14, 1
      %s20 = ssub.s32 %s14, 2
      %s27 = sadd.s32 1, %s22
      %p28 = scmp.ge.s32.totalorder %s27, 2
      %s29 = scalar_select %p28, 0, %s27
      %s30 = sadd.s32 1, %s21
      %s31 = scalar_select %p28, %s30, %s21
      %p32 = scmp.ge.s32.totalorder %s31, 2
      %s33 = scalar_select %p32, 0, %s31
      %s34 = ssub.s32 %s21, %s33
      %p35 = scmp.eq.s32.totalorder %s34, 0
      %s37 = sadd.s32 %s36, 1
      %s38 = scalar_select %p35, %s36, %s37
      %p41 = pneg %p35
      %p42 = scmp.eq.s32.totalorder %s14, 3
      %p43 = por %p41, %p42
      %p44 = scmp.ne.s32.totalorder %s36, %s39
      %p45 = scmp.eq.s32.totalorder %s14, 0
      %p46 = por %p44, %p45
      %p47 = scmp.ne.s32.totalorder %s36, %s39
      %p48 = scmp.eq.s32.totalorder %s19, 3
      %p49 = por %p47, %p48
      %p50 = scmp.ne.s32.totalorder %s39, %s40
      %p51 = scmp.eq.s32.totalorder %s19, 0
      %p52 = por %p50, %p51
      %p53 = scmp.ne.s32.totalorder %s39, %s40
      %p54 = scmp.eq.s32.totalorder %s20, 3
      %p55 = por %p53, %p54
      %p57 = scmp.ne.s32.totalorder %s40, %s56
      %p58 = scmp.eq.s32.totalorder %s20, 0
      %p59 = por %p57, %p58
      %s61 = sadd.s32 %s60, 1
      %p64 = scmp.eq.s32.totalorder %s14, 3
      %p65 = scmp.ne.s32.totalorder %s60, %s62
      %p66 = scmp.eq.s32.totalorder %s14, 0
      %p67 = por %p65, %p66
      %p68 = scmp.ne.s32.totalorder %s60, %s62
      %p69 = scmp.eq.s32.totalorder %s19, 3
      %p70 = por %p68, %p69
      %p71 = scmp.ne.s32.totalorder %s62, %s63
      %p72 = scmp.eq.s32.totalorder %s19, 0
      %p73 = por %p71, %p72
      %p74 = scmp.ne.s32.totalorder %s62, %s63
      %p75 = scmp.eq.s32.totalorder %s20, 3
      %p76 = por %p74, %p75
      %p78 = scmp.ne.s32.totalorder %s63, %s77
      %p79 = scmp.eq.s32.totalorder %s20, 0
      %p80 = por %p78, %p79
      %s82 = sadd.s32 %s81, 1
      %p85 = scmp.eq.s32.totalorder %s14, 3
      %p86 = scmp.ne.s32.totalorder %s81, %s83
      %p87 = scmp.eq.s32.totalorder %s14, 0
      %p88 = por %p86, %p87
      %p89 = scmp.ne.s32.totalorder %s81, %s83
      %p90 = scmp.eq.s32.totalorder %s19, 3
      %p91 = por %p89, %p90
      %p92 = scmp.ne.s32.totalorder %s83, %s84
      %p93 = scmp.eq.s32.totalorder %s19, 0
      %p94 = por %p92, %p93
      %p95 = scmp.ne.s32.totalorder %s83, %s84
      %p96 = scmp.eq.s32.totalorder %s20, 3
      %p97 = por %p95, %p96
      %p99 = scmp.ne.s32.totalorder %s84, %s98
      %p100 = scmp.eq.s32.totalorder %s20, 0
      %p101 = por %p99, %p100
      %s103 = sadd.s32 %s102, 1
      %p106 = scmp.eq.s32.totalorder %s14, 3
      %p107 = scmp.ne.s32.totalorder %s102, %s104
      %p108 = scmp.eq.s32.totalorder %s14, 0
      %p109 = por %p107, %p108
      %p110 = scmp.ne.s32.totalorder %s102, %s104
      %p111 = scmp.eq.s32.totalorder %s19, 3
      %p112 = por %p110, %p111
      %p113 = scmp.ne.s32.totalorder %s104, %s105
      %p114 = scmp.eq.s32.totalorder %s19, 0
      %p115 = por %p113, %p114
      %p116 = scmp.ne.s32.totalorder %s104, %s105
      %p117 = scmp.eq.s32.totalorder %s20, 3
      %p118 = por %p116, %p117
      %p120 = scmp.ne.s32.totalorder %s105, %s119
      %p121 = scmp.eq.s32.totalorder %s20, 0
      %p122 = por %p120, %p121
      %s124 = sadd.s32 %s123, 1
      %p127 = scmp.eq.s32.totalorder %s14, 3
      %p128 = scmp.ne.s32.totalorder %s123, %s125
      %p129 = scmp.eq.s32.totalorder %s14, 0
      %p130 = por %p128, %p129
      %p131 = scmp.ne.s32.totalorder %s123, %s125
      %p132 = scmp.eq.s32.totalorder %s19, 3
      %p133 = por %p131, %p132
      %p134 = scmp.ne.s32.totalorder %s125, %s126
      %p135 = scmp.eq.s32.totalorder %s19, 0
      %p136 = por %p134, %p135
      %p137 = scmp.ne.s32.totalorder %s125, %s126
      %p138 = scmp.eq.s32.totalorder %s20, 3
      %p139 = por %p137, %p138
      %p141 = scmp.ne.s32.totalorder %s126, %s140
      %p142 = scmp.eq.s32.totalorder %s20, 0
      %p143 = por %p141, %p142
      %s144 = ssub.s32 %s21, %s33
      %p145 = scmp.eq.s32.totalorder %s144, 0
      %s147 = sadd.s32 %s146, 1
      %s148 = scalar_select %p145, %s146, %s147
      %p151 = pneg %p145
      %p152 = scmp.eq.s32.totalorder %s14, 3
      %p153 = por %p151, %p152
      %p154 = scmp.ne.s32.totalorder %s146, %s149
      %p155 = scmp.eq.s32.totalorder %s14, 0
      %p156 = por %p154, %p155
      %p157 = scmp.ne.s32.totalorder %s146, %s149
      %p158 = scmp.eq.s32.totalorder %s19, 3
      %p159 = por %p157, %p158
      %p160 = scmp.ne.s32.totalorder %s149, %s150
      %p161 = scmp.eq.s32.totalorder %s19, 0
      %p162 = por %p160, %p161
      %p163 = scmp.ne.s32.totalorder %s149, %s150
      %p164 = scmp.eq.s32.totalorder %s20, 3
      %p165 = por %p163, %p164
      %p167 = scmp.ne.s32.totalorder %s150, %s166
      %p168 = scmp.eq.s32.totalorder %s20, 0
      %p169 = por %p167, %p168
      %p170 = scmp.le.s32.totalorder 1, %s14
      %p171 = scmp.lt.s32.totalorder %s14, 5
      %p172 = pnand %p170, %p171
      %p173 = pneg %p172
      // Predicated region
      $region9: #{tpu_custom_call.1} parent=5 // pred_check
        _
      $region10: #{tpu_custom_call.1} parent=5 // pred_check_branch
        %175 = sbr.rel (%p172) target = $region12
      $region11: #{tpu_custom_call.1} parent=5 // pred_region
        %s176 = ssub.s32 %s14, 1
        // Predicated region
        $region13: #{tpu_custom_call.1} parent=11 // pred_check
          %p177 = pneg %p73
        $region14: #{tpu_custom_call.1} parent=11 // pred_check_branch
          %179 = sbr.rel (%p177) target = $region16
        $region15: #{tpu_custom_call.1} parent=11 // pred_region
          _
        $region16: #{tpu_custom_call.1} parent=11 // pred_fallthru
          _
        // Predicated region
        $region17: #{tpu_custom_call.1} parent=11 // pred_check
          %p180 = pneg %p94
        $region18: #{tpu_custom_call.1} parent=11 // pred_check_branch
          %182 = sbr.rel (%p180) target = $region20
        $region19: #{tpu_custom_call.1} parent=11 // pred_region
          _
        $region20: #{tpu_custom_call.1} parent=11 // pred_fallthru
          _
        // Predicated region
        $region21: #{tpu_custom_call.1} parent=11 // pred_check
          %p183 = pneg %p115
        $region22: #{tpu_custom_call.1} parent=11 // pred_check_branch
          %185 = sbr.rel (%p183) target = $region24
        $region23: #{tpu_custom_call.1} parent=11 // pred_region
          _
        $region24: #{tpu_custom_call.1} parent=11 // pred_fallthru
          _
        // Predicated region
        $region25: #{tpu_custom_call.1} parent=11 // pred_check
          %p186 = pneg %p136
        $region26: #{tpu_custom_call.1} parent=11 // pred_check_branch
          %188 = sbr.rel (%p186) target = $region28
        $region27: #{tpu_custom_call.1} parent=11 // pred_region
          _
        $region28: #{tpu_custom_call.1} parent=11 // pred_fallthru
          _
      $region12: #{tpu_custom_call.1} parent=5 // pred_fallthru
        _
      %p189 = scmp.lt.s32.totalorder %s14, 4
      // Predicated region
      $region29: #{tpu_custom_call.1} parent=5 // pred_check
        %p190 = pneg %p189
      $region30: #{tpu_custom_call.1} parent=5 // pred_check_branch
        %192 = sbr.rel (%p190) target = $region32
      $region31: #{tpu_custom_call.1} parent=5 // pred_region
        // Predicated region
        $region33: #{tpu_custom_call.1} parent=31 // pred_check
          %p193 = pneg %p46
        $region34: #{tpu_custom_call.1} parent=31 // pred_check_branch
          %195 = sbr.rel (%p193) target = $region36
        $region35: #{tpu_custom_call.1} parent=31 // pred_region
          %p196 = scmp.lt.s32.totalorder %s21, 1
          %s197 = scalar_select %p196, %s21, 1
          %s198 = smul.addr %s197, 8
          %s199 = scalar_lea.vmem %s0, %s198
        $region36: #{tpu_custom_call.1} parent=31 // pred_fallthru
          _
      $region32: #{tpu_custom_call.1} parent=5 // pred_fallthru
        _
      %p200 = scmp.le.s32.totalorder 1, %s14
      %p201 = scmp.lt.s32.totalorder %s14, 5
      %p202 = pnand %p200, %p201
      %p203 = pneg %p202
      // Predicated region
      $region37: #{tpu_custom_call.1} parent=5 // pred_check
        _
      $region38: #{tpu_custom_call.1} parent=5 // pred_check_branch
        %205 = sbr.rel (%p202) target = $region40
      $region39: #{tpu_custom_call.1} parent=5 // pred_region
        %s206 = ssub.s32 %s14, 1
        %p207 = scmp.lt.s32.totalorder %s23, 1
        %s208 = scalar_select %p207, %s23, 1
        %s209 = smul.addr %s208, 8
        %s210 = scalar_lea.vmem %s0, %s209
        %p211 = pneg %p52
        %p212 = pneg %p49
        %p213 = pneg %p73
        %p214 = pneg %p70
        %p215 = pneg %p94
        %p216 = pneg %p91
        %p217 = pneg %p115
        %p218 = pneg %p112
        %p219 = pneg %p136
        %p220 = pneg %p133
        %p221 = pneg %p162
        %p222 = pneg %p159
        %s223 = sand.u32 %s149, 1
        %s224 = scalar_lea.sflag [#allocation4], %s223
        %s225 = sand.u32 %s149, 1
        %s226 = smul.addr %s225, 8
        %s227 = scalar_lea.vmem [#allocation3], %s226
        %p228 = scmp.lt.s32.totalorder %s23, 1
        %s229 = scalar_select %p228, %s23, 1
        %s230 = smul.addr %s229, 8
        %s231 = scalar_lea.vmem %s0, %s230
        %p232 = scmp.eq.s32.totalorder %s24, 0
        // Predicated region
        $region41: #{tpu_custom_call.1} parent=39 // pred_check
          %p233 = pneg %p232
        $region42: #{tpu_custom_call.1} parent=39 // pred_check_branch
          %235 = sbr.rel (%p233) target = $region44
        $region43: #{tpu_custom_call.1} parent=39 // pred_region
          %vm236 = vcmask 261120
          %237 = vst.msk [vmem:[#allocation2] sm:$0xff] %vm236, 0.0
          %vm238 = vcmask 253952
          %239 = vst.msk [vmem:[#allocation2 + $0x10] sm:$0x1] %vm238, 0.0
          %v240 = vld [vmem:[%s231] sm:$0xff]
          %241 = vst.msk [vmem:[#allocation2 + $0x8] sm:$0xff] %vm236, %v240
        $region44: #{tpu_custom_call.1} parent=39 // pred_fallthru
          _
        %v242 = vld [vmem:[#allocation2 + $0x7] sm:$0xff]
        %v243 = vld [vmem:[#allocation2 + $0x8] sm:$0xff]
        %v244 = vld [vmem:[#allocation2 + $0x9] sm:$0xff]
        %246 = vrot.lane.b32.xlu0 %v243, 32
        %v247 = vpop.permute.xlu0 %246
        %250 = vrot.lane.b32.xlu0 %v244, 64
        %v251 = vpop.permute.xlu0 %250
        %vm253 = vcmask 261120
        %v254 = vsel %vm253, %v242, %v247
        %vm255 = vcmask 523264
        %v256 = vsel %vm255, %v254, %v251
        %s257 = smul.u32 %s24, 96
        %s258 = scalar_lea.vmem %s1, %s257
        %v259 = vld [vmem:[%s258] sm:$0xff]
        %v260 = vld [vmem:[%s258 + $0x8] sm:$0xff]
        %v261 = vld [vmem:[%s258 + $0x10] sm:$0xff]
        %v262 = vld [vmem:[%s258 + $0x18] sm:$0xff]
        %v263 = vld [vmem:[%s258 + $0x20] sm:$0xff]
        %v264 = vld [vmem:[%s258 + $0x28] sm:$0xff]
        %v265 = vld [vmem:[%s258 + $0x30] sm:$0xff]
        %v266 = vld [vmem:[%s258 + $0x38] sm:$0xff]
        %v267 = vld [vmem:[%s258 + $0x40] sm:$0xff]
        %v268 = vld [vmem:[%s258 + $0x48] sm:$0xff]
        %v269 = vld [vmem:[%s258 + $0x50] sm:$0xff]
        %v270 = vld [vmem:[%s258 + $0x58] sm:$0xff]
        %vm271 = vcmask 785408
        %v273 = vsel %vm271, %v256, 0
        %275 = vmatpush.msra.mxu0 0.0
        %276 = vmatpush.msra.mxu0 0.0
        %277 = vmatpush.msra.mxu0 0.0
        %278 = vmatpush.msra.mxu0 0.0
        %279 = vmatpush.msra.mxu0 %v270
        %280 = vmatpush.msra.mxu0 %v269
        %281 = vmatpush.msra.mxu0 %v268
        %282 = vmatpush.msra.mxu0 %v267
        %283 = vmatpush.msra.mxu0 %v266
        %284 = vmatpush.msra.mxu0 %v265
        %285 = vmatpush.msra.mxu0 %v264
        %286 = vmatpush.msra.mxu0 %v263
        %287 = vmatpush.msra.mxu0 %v262
        %288 = vmatpush.msra.mxu0 %v261
        %289 = vmatpush.msra.mxu0 %v260
        %290 = vmatpush.msra.mxu0 %v259
        %291 = vmatmul.f32.gmra.mxu0 %v273
        %v292 = vpop.f32.mrf.mxu0
        %v293 = vadd.f32 0.0, %v292
        %294 = vdwg.mxu0
        %v295 = vxor.u32 %v293, 2147483648
        %v296 = vmul.f32 %v295, 1.442695
        %v297 = vpow.pop %v296
        %v298 = vadd.f32 %v297, 1.0
        %v299 = vrcp.pop %v298
        %v300 = vmul.f32 %v298, %v299
        %v301 = vsub.f32 1.0, %v300
        %v302 = vmul.f32 %v299, %v301
        %v303 = vadd.f32 %v299, %v302
        %vm304 = vweird.f32 %v298
        %vm305 = vweird.f32 %v299
        %vm306 = vmor %vm304, %vm305
        %v307 = vsel %vm306, %v299, %v303
        %v308 = vand.u32 2147483647, %v298
        %vm309 = vcmp.eq.f32.partialorder %v308, 8.507059e+37
        %v310 = vand.u32 %v298, 2147483648
        %v311 = vor.u32 1.1754944e-38, %v310
        %v312 = vsel %vm309, %v311, %v307
        %v313 = vmul.f32 1.0, %v312
        %315 = vrot.lane.b32.xlu0 %v313, 96
        %v316 = vpop.permute.xlu0 %315
        %v318 = vmul.f32 %v293, %v316
        %v319 = vadd.f32 %v318, %v243
        %s320 = smul.u32 %s24, 8
        %s321 = scalar_lea.vmem %s4, %s320
        %v322 = vld [vmem:[%s321] sm:$0xff]
        %v323 = vsel %vm253, %v319, 0.0
        %324 = vadd.xlane.f32.xlu0 %v323
        %v325 = vpop.xlane.xlu0 %324
        %v326 = vrcp.pop 32.0
        %v327 = vmul.f32 32.0, %v326
        %v328 = vsub.f32 1.0, %v327
        %v329 = vmul.f32 %v326, %v328
        %v330 = vadd.f32 %v326, %v329
        %vm331 = vweird.f32 %v326
        %v332 = vsel %vm331, %v326, %v330
        %v333 = vmul.f32 %v325, %v332
        %v334 = vsub.f32 %v319, %v333
        %v335 = vmul.f32 %v334, %v334
        %v336 = vsel %vm253, %v335, 0.0
        %337 = vadd.xlane.f32.xlu0 %v336
        %v338 = vpop.xlane.xlu0 %337
        %v339 = vmul.f32 %v338, %v332
        %v340 = vadd.f32 %v339, 1e-05
        %v341 = vrsqrt.pop %v340
        %v342 = vmul.f32 %v341, %v340
        %v343 = vmul.f32 %v342, %v341
        %v344 = vmul.f32 0.5, %v343
        %v345 = vsub.f32 1.5, %v344
        %v346 = vmul.f32 %v341, %v345
        %vm347 = vweird.f32 %v340
        %vm348 = vweird.f32 %v341
        %vm349 = vmor %vm347, %vm348
        %v350 = vsel %vm349, %v341, %v346
        %v351 = vmul.f32 %v334, %v350
        %v352 = vperm.slane %v322, 2
        %v353 = vmul.f32 %v351, %v352
        %v354 = vperm.slane %v322, 3
        %v355 = vadd.f32 %v353, %v354
        %s356 = smul.u32 %s24, 32
        %s357 = scalar_lea.vmem %s2, %s356
        %v358 = vld [vmem:[%s357] sm:$0xff]
        %v359 = vld [vmem:[%s357 + $0x8] sm:$0xff]
        %v360 = vld [vmem:[%s357 + $0x10] sm:$0xff]
        %v361 = vld [vmem:[%s357 + $0x18] sm:$0xff]
        %v362 = vperm.slane %v322, 0
        %v364 = vsel %vm253, %v355, 0
        %366 = vmatpush.msra.mxu0 0.0
        %367 = vmatpush.msra.mxu0 0.0
        %368 = vmatpush.msra.mxu0 0.0
        %369 = vmatpush.msra.mxu0 0.0
        %370 = vmatpush.msra.mxu0 0.0
        %371 = vmatpush.msra.mxu0 0.0
        %372 = vmatpush.msra.mxu0 0.0
        %373 = vmatpush.msra.mxu0 0.0
        %374 = vmatpush.msra.mxu0 0.0
        %375 = vmatpush.msra.mxu0 0.0
        %376 = vmatpush.msra.mxu0 0.0
        %377 = vmatpush.msra.mxu0 0.0
        %378 = vmatpush.msra.mxu0 %v361
        %379 = vmatpush.msra.mxu0 %v360
        %380 = vmatpush.msra.mxu0 %v359
        %381 = vmatpush.msra.mxu0 %v358
        %382 = vmatmul.f32.gmra.mxu0 %v364
        %v383 = vpop.f32.mrf.mxu0
        %v384 = vadd.f32 %v362, %v383
        %385 = vdwg.mxu0
        %v386 = vmax.f32 %v384, 0.0
        %s387 = scalar_lea.vmem %s3, %s356
        %v388 = vld [vmem:[%s387] sm:$0xff]
        %v389 = vld [vmem:[%s387 + $0x8] sm:$0xff]
        %v390 = vld [vmem:[%s387 + $0x10] sm:$0xff]
        %v391 = vld [vmem:[%s387 + $0x18] sm:$0xff]
        %v392 = vperm.slane %v322, 1
        %v394 = vsel %vm253, %v386, 0
        %396 = vmatpush.msra.mxu0 0.0
        %397 = vmatpush.msra.mxu0 0.0
        %398 = vmatpush.msra.mxu0 0.0
        %399 = vmatpush.msra.mxu0 0.0
        %400 = vmatpush.msra.mxu0 0.0
        %401 = vmatpush.msra.mxu0 0.0
        %402 = vmatpush.msra.mxu0 0.0
        %403 = vmatpush.msra.mxu0 0.0
        %404 = vmatpush.msra.mxu0 0.0
        %405 = vmatpush.msra.mxu0 0.0
        %406 = vmatpush.msra.mxu0 0.0
        %407 = vmatpush.msra.mxu0 0.0
        %408 = vmatpush.msra.mxu0 %v391
        %409 = vmatpush.msra.mxu0 %v390
        %410 = vmatpush.msra.mxu0 %v389
        %411 = vmatpush.msra.mxu0 %v388
        %412 = vmatmul.f32.gmra.mxu0 %v394
        %v413 = vpop.f32.mrf.mxu0
        %v414 = vadd.f32 %v392, %v413
        %415 = vdwg.mxu0
        %v416 = vadd.f32 %v355, %v414
        %v417 = vsel %vm253, %v416, 0.0
        %418 = vadd.xlane.f32.xlu0 %v417
        %v419 = vpop.xlane.xlu0 %418
        %v420 = vmul.f32 %v419, %v332
        %v421 = vsub.f32 %v416, %v420
        %v422 = vmul.f32 %v421, %v421
        %v423 = vsel %vm253, %v422, 0.0
        %424 = vadd.xlane.f32.xlu0 %v423
        %v425 = vpop.xlane.xlu0 %424
        %v426 = vmul.f32 %v425, %v332
        %v427 = vadd.f32 %v426, 1e-05
        %v428 = vrsqrt.pop %v427
        %v429 = vmul.f32 %v428, %v427
        %v430 = vmul.f32 %v429, %v428
        %v431 = vmul.f32 0.5, %v430
        %v432 = vsub.f32 1.5, %v431
        %v433 = vmul.f32 %v428, %v432
        %vm434 = vweird.f32 %v427
        %vm435 = vweird.f32 %v428
        %vm436 = vmor %vm434, %vm435
        %v437 = vsel %vm436, %v428, %v433
        %v438 = vmul.f32 %v421, %v437
        %v439 = vperm.slane %v322, 4
        %v440 = vmul.f32 %v438, %v439
        %v441 = vperm.slane %v322, 5
        %v442 = vadd.f32 %v440, %v441
        %p443 = scmp.lt.s32.totalorder %s24, 1
        // Predicated region
        $region45: #{tpu_custom_call.1} parent=39 // pred_check
          %p444 = pneg %p443
        $region46: #{tpu_custom_call.1} parent=39 // pred_check_branch
          %446 = sbr.rel (%p444) target = $region48
        $region47: #{tpu_custom_call.1} parent=39 // pred_region
          %447 = vst.msk [vmem:[#allocation2 + $0x8] sm:$0xff] %vm253, %v442
        $region48: #{tpu_custom_call.1} parent=39 // pred_fallthru
          _
        %p448 = scmp.eq.s32.totalorder %s24, 1
        // Predicated region
        $region49: #{tpu_custom_call.1} parent=39 // pred_check
          %p449 = pneg %p448
        $region50: #{tpu_custom_call.1} parent=39 // pred_check_branch
          %451 = sbr.rel (%p449) target = $region52
        $region51: #{tpu_custom_call.1} parent=39 // pred_region
          %452 = vst.msk [vmem:[%s227] sm:$0xff] %vm253, %v442
        $region52: #{tpu_custom_call.1} parent=39 // pred_fallthru
          _
        %s453 = sand.u32 %s149, 1
        %s454 = scalar_lea.sflag [#allocation4], %s453
        %s455 = sand.u32 %s149, 1
        %s456 = smul.addr %s455, 8
        %s457 = scalar_lea.vmem [#allocation3], %s456
        // Predicated region
        $region53: #{tpu_custom_call.1} parent=39 // pred_check
          %p458 = pneg %p159
        $region54: #{tpu_custom_call.1} parent=39 // pred_check_branch
          %460 = sbr.rel (%p458) target = $region56
        $region55: #{tpu_custom_call.1} parent=39 // pred_region
          %462 = vsyncadd %s454, 0
          %s463 = smul.addr %s23, 8
          %s464 = scalar_lea.hbm %s5, %s463
          %s466 = sshll.u32 %s457, 4
          %s467 = int_to_ptr.vmem [resolvable:$true] %s466
          %s468 = sshll.u32 %s464, 4
          %s469 = int_to_ptr.hbm [resolvable:$true] %s468
          %471 = dma.vmem_to_hbm [thread:$0]  %s467, 128, %s469, %s454
        $region56: #{tpu_custom_call.1} parent=39 // pred_fallthru
          _
      $region40: #{tpu_custom_call.1} parent=5 // pred_fallthru
        _
      %p472 = scmp.le.s32.totalorder 2, %s14
      // Predicated region
      $region57: #{tpu_custom_call.1} parent=5 // pred_check
        %p473 = pneg %p472
      $region58: #{tpu_custom_call.1} parent=5 // pred_check_branch
        %475 = sbr.rel (%p473) target = $region60
      $region59: #{tpu_custom_call.1} parent=5 // pred_region
        %s476 = ssub.s32 %s14, 2
        // Predicated region
        $region61: #{tpu_custom_call.1} parent=59 // pred_check
          %p477 = pneg %p165
        $region62: #{tpu_custom_call.1} parent=59 // pred_check_branch
          %479 = sbr.rel (%p477) target = $region64
        $region63: #{tpu_custom_call.1} parent=59 // pred_region
          %s480 = sand.u32 %s150, 1
          %s481 = scalar_lea.sflag [#allocation4], %s480
          %s482 = sand.u32 %s150, 1
          %s483 = smul.addr %s482, 8
          %s484 = scalar_lea.vmem [#allocation3], %s483
          %486 = dma.done %s481, 128
        $region64: #{tpu_custom_call.1} parent=59 // pred_fallthru
          _
      $region60: #{tpu_custom_call.1} parent=5 // pred_fallthru
        _
    $region6: #{tpu_custom_call.1} parent=1 // loop_footer
      %s18 = sadd.s32 1, %s14
    $region7: #{tpu_custom_call.1} parent=1 // loop_footer_branch
      %13 = sbr.rel target = $region3
    $region8: #{tpu_custom_call.1} parent=1 // loop_exit
      _
    %487 = vsyncpa [#allocation4], 1
    %s488 = scalar_lea.sflag [#allocation4], 1
    %489 = vsyncpa %s488, 1

</llo_original>
